<compile_context>
chip_gen: v7x
topology: tpu7x:2x2x1
jax: 0.10.0
libtpu: 0.0.40
codegen_flags: <defaults>
</compile_context>

<pallas_src>
import jax
import jax.numpy as jnp
from jax.experimental import pallas as pl
from jax.experimental.pallas import tpu as pltpu

C = 245  # fixed by the module definition (Conv2d(245, 245, 1, 1, 0, bias=False))


def _sam_kernel(w_ref, shift_ref, cem_ref, rpn_ref, out_ref):
    # 1x1 conv == (Cout, Cin) @ (Cin, tile_hw) matmul on the MXU, bf16 operands with
    # f32 accumulation.  BN scale is already folded into w_ref; only the shift remains.
    rpn_bf16 = rpn_ref[...].astype(jnp.bfloat16)          # no-op if input is bf16
    s = jnp.dot(w_ref[...], rpn_bf16, preferred_element_type=jnp.float32)
    s = s + shift_ref[...]                                # (C, 1) broadcast over lanes
    gate = jax.nn.sigmoid(s)                              # exp + recip on the EUP slot
    out_ref[...] = (cem_ref[...].astype(jnp.float32) * gate).astype(out_ref.dtype)


def _tile_cfg():
    """Per-generation lane-tile target and scoped-VMEM limit.

    v5e/v6e: 128 MiB physical VMEM -> big tiles (4096 lanes), 64 MiB scoped limit.
    v7x (64 MiB VMEM per TC) and anything unrecognized: conservative 2048-lane cap,
    40 MiB scoped limit.
    """
    kind = ""
    try:
        kind = jax.devices()[0].device_kind.lower()
    except Exception:
        pass
    if "v5" in kind or "v6" in kind:
        return 4096, 64 * 1024 * 1024
    return 2048, 40 * 1024 * 1024


def _pick_tile_hw(hw_padded, target):
    """hw_padded is a multiple of 128.  Return the largest multiple of 128 that is
    <= min(target, hw_padded) and divides hw_padded exactly, so every tile is
    lane-dense and there is never a ragged / masked tail tile."""
    cap = max(128, (min(target, hw_padded) // 128) * 128)
    for cand in range(cap, 127, -128):
        if hw_padded % cand == 0:
            return cand
    return 128  # unreachable: 128 always divides hw_padded


def sam_forward(inp, conv_weight, gamma, beta, running_mean, running_var, eps=1e-5):
    """inp: (2, N, C, H, W) stacked as (cem, rpn), NCHW like the PyTorch module."""
    cem, rpn = inp[0], inp[1]
    N, Cc, H, W = cem.shape
    assert Cc == C
    HW = H * W

    # Free reshapes (contiguous) -- keep NCHW, no transposes.
    cem3 = cem.reshape(N, C, HW)
    rpn3 = rpn.reshape(N, C, HW)

    # Pad the spatial (lane) axis to a multiple of 128 so every output tile is
    # lane-dense (unmasked vst).  Padded rpn lanes are zero -> finite sigmoid(shift);
    # padded cem lanes are zero -> zero output; the pad is sliced off below.
    hw_padded = ((HW + 127) // 128) * 128
    if hw_padded != HW:
        pad = hw_padded - HW
        cem3 = jnp.pad(cem3, ((0, 0), (0, 0), (0, pad)))
        rpn3 = jnp.pad(rpn3, ((0, 0), (0, 0), (0, pad)))

    # Fold inference-mode BN into the conv weight (per-output-channel scale) plus a
    # per-channel shift.  (Cout, Cin, 1, 1) -> (Cout, Cin).  Cast the folded weight to
    # bf16 (tiny array, no HBM cost) so the MXU runs native single-pass bf16 matmuls.
    inv_std = 1.0 / jnp.sqrt(running_var.astype(jnp.float32) + eps)
    scale = gamma.astype(jnp.float32) * inv_std                        # (C,)
    shift = beta.astype(jnp.float32) - running_mean.astype(jnp.float32) * scale
    w = conv_weight[:, :, 0, 0].astype(jnp.float32)                    # (Cout, Cin)
    w_scaled = (w * scale[:, None]).astype(jnp.bfloat16)               # BN scale folded
    shift2 = shift.reshape(C, 1)                                       # stays f32

    target, vmem_limit = _tile_cfg()
    tile_hw = _pick_tile_hw(hw_padded, target)
    if N == 1 and tile_hw == hw_padded and hw_padded >= 256:
        # Keep >= 2 steps on a parallel grid axis so both v7x TensorCores get work.
        tile_hw = _pick_tile_hw(hw_padded, hw_padded // 2)
    grid = (N, pl.cdiv(hw_padded, tile_hw))

    out3 = pl.pallas_call(
        _sam_kernel,
        out_shape=jax.ShapeDtypeStruct((N, C, hw_padded), cem3.dtype),
        grid=grid,
        in_specs=[
            pl.BlockSpec((C, C), lambda n, j: (0, 0)),                 # folded bf16 weight (resident)
            pl.BlockSpec((C, 1), lambda n, j: (0, 0)),                 # BN shift (resident)
            pl.BlockSpec((None, C, tile_hw), lambda n, j: (n, 0, j)),  # cem tile (batch squeezed)
            pl.BlockSpec((None, C, tile_hw), lambda n, j: (n, 0, j)),  # rpn tile (batch squeezed)
        ],
        out_specs=pl.BlockSpec((None, C, tile_hw), lambda n, j: (n, 0, j)),
        compiler_params=pltpu.CompilerParams(
            dimension_semantics=("parallel", "parallel"),
            vmem_limit_bytes=vmem_limit,
        ),
    )(w_scaled, shift2, cem3, rpn3)

    if hw_padded != HW:
        out3 = out3[:, :, :HW]
    return out3.reshape(N, C, H, W)


def _reference(inp, conv_weight, gamma, beta, running_mean, running_var, eps=1e-5):
    cem, rpn = inp[0], inp[1]
    w = conv_weight[:, :, 0, 0]  # (Cout, Cin)
    sam = jnp.einsum("oc,nchw->nohw", w, rpn)
    scale = gamma / jnp.sqrt(running_var + eps)
    shift = beta - running_mean * scale
    sam = sam * scale[None, :, None, None] + shift[None, :, None, None]
    sam = jax.nn.sigmoid(sam)
    return cem * sam


if __name__ == "__main__":
    key = jax.random.PRNGKey(0)
    k_in, k_w, k_g, k_b, k_m, k_v = jax.random.split(key, 6)

    N, H, W = 2, 8, 8
    # Stacked (cem, rpn) input, NCHW each — mirrors `input[0]`, `input[1]`.
    inp = jax.random.normal(k_in, (2, N, C, H, W), dtype=jnp.float32)

    # Deterministic synthetic parameters (shapes from nn.Conv2d / nn.BatchNorm2d).
    conv_weight = jax.random.normal(k_w, (C, C, 1, 1), dtype=jnp.float32) * (1.0 / jnp.sqrt(C))
    gamma = 1.0 + 0.1 * jax.random.normal(k_g, (C,), dtype=jnp.float32)
    beta = 0.1 * jax.random.normal(k_b, (C,), dtype=jnp.float32)
    running_mean = 0.1 * jax.random.normal(k_m, (C,), dtype=jnp.float32)
    running_var = 1.0 + 0.1 * jax.random.uniform(k_v, (C,), dtype=jnp.float32)

    out = sam_forward(inp, conv_weight, gamma, beta, running_mean, running_var)
    out = jax.block_until_ready(out)

    ref = _reference(inp, conv_weight, gamma, beta, running_mean, running_var)
    assert out.shape == (N, C, H, W)
    # Tolerance accounts for bf16 MXU operands (f32 accumulation); mean error stays tiny.
    assert jnp.allclose(out, ref, rtol=2e-2, atol=2e-2), "mismatch vs JAX reference"
    assert float(jnp.mean(jnp.abs(out - ref))) < 2e-3, "mean error too large vs JAX reference"

    print("KERNEL_OK")
</pallas_src>

<mosaic_0001>
module attributes {stable_mosaic.version = 11 : i64} {
  func.func @_sam_kernel(%arg0: i32, %arg1: i32, %arg2: memref<245x245xbf16, #tpu.memory_space<vmem>>, %arg3: memref<245x1xf32, #tpu.memory_space<vmem>>, %arg4: memref<1x245x128xf32, #tpu.memory_space<vmem>>, %arg5: memref<1x245x128xf32, #tpu.memory_space<vmem>>, %arg6: memref<1x245x128xf32, #tpu.memory_space<vmem>>) attributes {dimension_semantics = [#tpu.dimension_semantics<parallel>, #tpu.dimension_semantics<parallel>], iteration_bounds = array<i64: 2, 1>, scalar_prefetch = 0 : i64, scratch_operands = 0 : i64, tpu.core_type = #tpu.core_type<tc>, window_params = [{pipeline_mode = #tpu.pipeline_mode<synchronous>, transform_indices = @transform_0, window_bounds = array<i64: 245, 245>}, {pipeline_mode = #tpu.pipeline_mode<synchronous>, transform_indices = @transform_1, window_bounds = array<i64: 245, 1>}, {transform_indices = @transform_2, window_bounds = array<i64: 1, 245, 128>}, {transform_indices = @transform_3, window_bounds = array<i64: 1, 245, 128>}, {transform_indices = @transform_4, window_bounds = array<i64: 1, 245, 128>}]} {
    %c0 = arith.constant 0 : index
    %c0_0 = arith.constant 0 : index
    %c0_1 = arith.constant 0 : index
    %0 = vector.load %arg5[%c0, %c0_0, %c0_1] : memref<1x245x128xf32, #tpu.memory_space<vmem>>, vector<1x245x128xf32>
    %1 = vector.shape_cast %0 : vector<1x245x128xf32> to vector<245x128xf32>
    %2 = arith.truncf %1 : vector<245x128xf32> to vector<245x128xbf16>
    %c0_2 = arith.constant 0 : index
    %c0_3 = arith.constant 0 : index
    %3 = vector.load %arg2[%c0_2, %c0_3] : memref<245x245xbf16, #tpu.memory_space<vmem>>, vector<245x245xbf16>
    %cst = arith.constant dense<0.000000e+00> : vector<245x128xf32>
    %4 = tpu.matmul %3, %2, %cst {dimension_numbers = #tpu.dot_dimension_numbers<[1], [0], [0], [1], [0, 0, 1, 1], [], []>} : vector<245x245xbf16>, vector<245x128xbf16>, vector<245x128xf32> -> vector<245x128xf32>
    %c0_4 = arith.constant 0 : index
    %c0_5 = arith.constant 0 : index
    %5 = vector.load %arg3[%c0_4, %c0_5] : memref<245x1xf32, #tpu.memory_space<vmem>>, vector<245x1xf32>
    %6 = vector.broadcast %5 : vector<245x1xf32> to vector<245x128xf32>
    %7 = arith.addf %4, %6 : vector<245x128xf32>
    %8 = arith.negf %7 : vector<245x128xf32>
    %9 = math.exp %8 : vector<245x128xf32>
    %cst_6 = arith.constant 1.000000e+00 : f32
    %10 = vector.broadcast %cst_6 : f32 to vector<245x128xf32>
    %11 = arith.addf %10, %9 : vector<245x128xf32>
    %12 = arith.divf %10, %11 : vector<245x128xf32>
    %c0_7 = arith.constant 0 : index
    %c0_8 = arith.constant 0 : index
    %c0_9 = arith.constant 0 : index
    %13 = vector.load %arg4[%c0_7, %c0_8, %c0_9] : memref<1x245x128xf32, #tpu.memory_space<vmem>>, vector<1x245x128xf32>
    %14 = vector.shape_cast %13 : vector<1x245x128xf32> to vector<245x128xf32>
    %15 = arith.mulf %14, %12 : vector<245x128xf32>
    %c0_10 = arith.constant 0 : index
    %c0_11 = arith.constant 0 : index
    %c0_12 = arith.constant 0 : index
    %16 = vector.load %arg6[%c0_10, %c0_11, %c0_12] : memref<1x245x128xf32, #tpu.memory_space<vmem>>, vector<1x245x128xf32>
    %17 = vector.shape_cast %16 : vector<1x245x128xf32> to vector<245x128xf32>
    %18 = vector.shape_cast %15 : vector<245x128xf32> to vector<1x245x128xf32>
    tpu.vector_store %arg6[%c0_10, %c0_11, %c0_12], %18 {strides = array<i32>} : memref<1x245x128xf32, #tpu.memory_space<vmem>>, vector<1x245x128xf32>,
    return
  }
  func.func @transform_0(%arg0: i32, %arg1: i32) -> (i32, i32) {
    %c0_i32 = arith.constant 0 : i32
    %c0_i32_0 = arith.constant 0 : i32
    %c0_i32_1 = arith.constant 0 : i32
    return %c0_i32, %c0_i32_0 : i32, i32
  }
  func.func @transform_1(%arg0: i32, %arg1: i32) -> (i32, i32) {
    %c0_i32 = arith.constant 0 : i32
    %c0_i32_0 = arith.constant 0 : i32
    %c0_i32_1 = arith.constant 0 : i32
    return %c0_i32, %c0_i32_0 : i32, i32
  }
  func.func @transform_2(%arg0: i32, %arg1: i32) -> (i32, i32, i32) {
    %c0_i32 = arith.constant 0 : i32
    %c0_i32_0 = arith.constant 0 : i32
    return %arg0, %c0_i32, %arg1 : i32, i32, i32
  }
  func.func @transform_3(%arg0: i32, %arg1: i32) -> (i32, i32, i32) {
    %c0_i32 = arith.constant 0 : i32
    %c0_i32_0 = arith.constant 0 : i32
    return %arg0, %c0_i32, %arg1 : i32, i32, i32
  }
  func.func @transform_4(%arg0: i32, %arg1: i32) -> (i32, i32, i32) {
    %c0_i32 = arith.constant 0 : i32
    %c0_i32_0 = arith.constant 0 : i32
    return %arg0, %c0_i32, %arg1 : i32, i32, i32
  }
}

</mosaic_0001>

<llo_original>
// kernel: tpu_custom_call.1
$region0: #{tpu_custom_call.1}
  #allocation0 [shape = 'u32[]', space=smem, size = 0x4, offset = 0x4, fixed_abs, tag = 'smem constant byte address 0x4 - core index']
  #allocation1 [shape = 'u32[144,128]{1,0:T(1,128)}', space=vmem, size = 0x12000, scoped, tag = 'internal scratch']
  %s0 = inlined_call_operand.vmem [shape: bf16[245,245], index: 0, kind: input, shape index: {}]
  %s1 = inlined_call_operand.vmem [shape: f32[245,1], index: 1, kind: input, shape index: {}]
  %s2 = inlined_call_operand.vmem [shape: f32[2,245,128], index: 2, kind: input, shape index: {}]
  %s3 = inlined_call_operand.vmem [shape: f32[2,245,128], index: 3, kind: input, shape index: {}]
  %s4 = inlined_call_operand.vmem [shape: f32[2,245,128], index: 4, kind: output, shape index: {}]
  %s5 = sld [smem:[#allocation0]]
  $region49: #{tpu_custom_call.1} parent=0
    _
  %s7 = ssub.s32 1, %s5
  %s8 = scalar_select 0, %s7, %s5
  loop: start=0, step=1, limit=4
  $region2: #{tpu_custom_call.1} parent=0 // loop_pre_header
    _
  $region3: #{tpu_custom_call.1} parent=0 // loop_header
    %s10 = sphi 0, %s14
    %p11 = scmp.ge.s32.totalorder %s10, 4
    %s17 = sphi 0, %s29
    %s18 = sphi 0, %s25
    %s19 = sphi 0, %s17
    %s20 = sphi 0, %s18
    %s21 = sphi 0, %s19
    %s22 = sphi 0, %s20
    %s30 = sphi 0, %s30
    %s32 = sphi 0, %s30
    %s33 = sphi 0, %s32
    %s47 = sphi 0, %s33
    %s51 = sphi 0, %s51
    %s53 = sphi 0, %s51
    %s54 = sphi 0, %s53
    %s68 = sphi 0, %s54
    %s76 = sphi 0, %s78
    %s79 = sphi 0, %s76
    %s80 = sphi 0, %s79
    %s96 = sphi 0, %s80
    %s104 = sphi 0, %s106
    %s107 = sphi 0, %s104
    %s108 = sphi 0, %s107
    %s124 = sphi 0, %s108
    %s132 = sphi 0, %s134
    %s135 = sphi 0, %s132
    %s136 = sphi 0, %s135
    %s152 = sphi 0, %s136
  $region4: #{tpu_custom_call.1} parent=0 // loop_header_branch
    %13 = sbr.rel (%p11) target = $region8
  $region5: #{tpu_custom_call.1} parent=0 // loop_body
    %s15 = ssub.s32 %s10, 1
    %s16 = ssub.s32 %s10, 2
    %s23 = sadd.s32 1, %s18
    %p24 = scmp.ge.s32.totalorder %s23, 1
    %s25 = scalar_select %p24, 0, %s23
    %s26 = sadd.s32 1, %s17
    %s27 = scalar_select %p24, %s26, %s17
    %p28 = scmp.ge.s32.totalorder %s27, 2
    %s29 = scalar_select %p28, 0, %s27
    %s31 = sadd.s32 %s30, 1
    %p34 = scmp.eq.s32.totalorder %s10, 1
    %p35 = scmp.ne.s32.totalorder %s30, %s32
    %p36 = scmp.eq.s32.totalorder %s10, 0
    %p37 = por %p35, %p36
    %p38 = scmp.ne.s32.totalorder %s30, %s32
    %p39 = scmp.eq.s32.totalorder %s15, 1
    %p40 = por %p38, %p39
    %p41 = scmp.ne.s32.totalorder %s32, %s33
    %p42 = scmp.eq.s32.totalorder %s15, 0
    %p43 = por %p41, %p42
    %p44 = scmp.ne.s32.totalorder %s32, %s33
    %p45 = scmp.eq.s32.totalorder %s16, 1
    %p46 = por %p44, %p45
    %p48 = scmp.ne.s32.totalorder %s33, %s47
    %p49 = scmp.eq.s32.totalorder %s16, 0
    %p50 = por %p48, %p49
    %s52 = sadd.s32 %s51, 1
    %p55 = scmp.eq.s32.totalorder %s10, 1
    %p56 = scmp.ne.s32.totalorder %s51, %s53
    %p57 = scmp.eq.s32.totalorder %s10, 0
    %p58 = por %p56, %p57
    %p59 = scmp.ne.s32.totalorder %s51, %s53
    %p60 = scmp.eq.s32.totalorder %s15, 1
    %p61 = por %p59, %p60
    %p62 = scmp.ne.s32.totalorder %s53, %s54
    %p63 = scmp.eq.s32.totalorder %s15, 0
    %p64 = por %p62, %p63
    %p65 = scmp.ne.s32.totalorder %s53, %s54
    %p66 = scmp.eq.s32.totalorder %s16, 1
    %p67 = por %p65, %p66
    %p69 = scmp.ne.s32.totalorder %s54, %s68
    %p70 = scmp.eq.s32.totalorder %s16, 0
    %p71 = por %p69, %p70
    %s72 = ssub.s32 %s17, %s29
    %s73 = ssub.s32 %s18, %s25
    %s74 = sor.u32 %s72, %s73
    %p75 = scmp.eq.s32.totalorder %s74, 0
    %s77 = sadd.s32 %s76, 1
    %s78 = scalar_select %p75, %s76, %s77
    %p81 = pneg %p75
    %p82 = scmp.eq.s32.totalorder %s10, 1
    %p83 = por %p81, %p82
    %p84 = scmp.ne.s32.totalorder %s76, %s79
    %p85 = scmp.eq.s32.totalorder %s10, 0
    %p86 = por %p84, %p85
    %p87 = scmp.ne.s32.totalorder %s76, %s79
    %p88 = scmp.eq.s32.totalorder %s15, 1
    %p89 = por %p87, %p88
    %p90 = scmp.ne.s32.totalorder %s79, %s80
    %p91 = scmp.eq.s32.totalorder %s15, 0
    %p92 = por %p90, %p91
    %p93 = scmp.ne.s32.totalorder %s79, %s80
    %p94 = scmp.eq.s32.totalorder %s16, 1
    %p95 = por %p93, %p94
    %p97 = scmp.ne.s32.totalorder %s80, %s96
    %p98 = scmp.eq.s32.totalorder %s16, 0
    %p99 = por %p97, %p98
    %s100 = ssub.s32 %s17, %s29
    %s101 = ssub.s32 %s18, %s25
    %s102 = sor.u32 %s100, %s101
    %p103 = scmp.eq.s32.totalorder %s102, 0
    %s105 = sadd.s32 %s104, 1
    %s106 = scalar_select %p103, %s104, %s105
    %p109 = pneg %p103
    %p110 = scmp.eq.s32.totalorder %s10, 1
    %p111 = por %p109, %p110
    %p112 = scmp.ne.s32.totalorder %s104, %s107
    %p113 = scmp.eq.s32.totalorder %s10, 0
    %p114 = por %p112, %p113
    %p115 = scmp.ne.s32.totalorder %s104, %s107
    %p116 = scmp.eq.s32.totalorder %s15, 1
    %p117 = por %p115, %p116
    %p118 = scmp.ne.s32.totalorder %s107, %s108
    %p119 = scmp.eq.s32.totalorder %s15, 0
    %p120 = por %p118, %p119
    %p121 = scmp.ne.s32.totalorder %s107, %s108
    %p122 = scmp.eq.s32.totalorder %s16, 1
    %p123 = por %p121, %p122
    %p125 = scmp.ne.s32.totalorder %s108, %s124
    %p126 = scmp.eq.s32.totalorder %s16, 0
    %p127 = por %p125, %p126
    %s128 = ssub.s32 %s17, %s29
    %s129 = ssub.s32 %s18, %s25
    %s130 = sor.u32 %s128, %s129
    %p131 = scmp.eq.s32.totalorder %s130, 0
    %s133 = sadd.s32 %s132, 1
    %s134 = scalar_select %p131, %s132, %s133
    %p137 = pneg %p131
    %p138 = scmp.eq.s32.totalorder %s10, 1
    %p139 = por %p137, %p138
    %p140 = scmp.ne.s32.totalorder %s132, %s135
    %p141 = scmp.eq.s32.totalorder %s10, 0
    %p142 = por %p140, %p141
    %p143 = scmp.ne.s32.totalorder %s132, %s135
    %p144 = scmp.eq.s32.totalorder %s15, 1
    %p145 = por %p143, %p144
    %p146 = scmp.ne.s32.totalorder %s135, %s136
    %p147 = scmp.eq.s32.totalorder %s15, 0
    %p148 = por %p146, %p147
    %p149 = scmp.ne.s32.totalorder %s135, %s136
    %p150 = scmp.eq.s32.totalorder %s16, 1
    %p151 = por %p149, %p150
    %p153 = scmp.ne.s32.totalorder %s136, %s152
    %p154 = scmp.eq.s32.totalorder %s16, 0
    %p155 = por %p153, %p154
    %p156 = scmp.le.s32.totalorder 1, %s10
    %p157 = scmp.lt.s32.totalorder %s10, 3
    %p158 = pnand %p156, %p157
    %p159 = pneg %p158
    // Predicated region
    $region9: #{tpu_custom_call.1} parent=5 // pred_check
      _
    $region10: #{tpu_custom_call.1} parent=5 // pred_check_branch
      %161 = sbr.rel (%p158) target = $region12
    $region11: #{tpu_custom_call.1} parent=5 // pred_region
      %s162 = ssub.s32 %s10, 1
      // Predicated region
      $region13: #{tpu_custom_call.1} parent=11 // pred_check
        %p163 = pneg %p43
      $region14: #{tpu_custom_call.1} parent=11 // pred_check_branch
        %165 = sbr.rel (%p163) target = $region16
      $region15: #{tpu_custom_call.1} parent=11 // pred_region
        _
      $region16: #{tpu_custom_call.1} parent=11 // pred_fallthru
        _
      // Predicated region
      $region17: #{tpu_custom_call.1} parent=11 // pred_check
        %p166 = pneg %p64
      $region18: #{tpu_custom_call.1} parent=11 // pred_check_branch
        %168 = sbr.rel (%p166) target = $region20
      $region19: #{tpu_custom_call.1} parent=11 // pred_region
        _
      $region20: #{tpu_custom_call.1} parent=11 // pred_fallthru
        _
    $region12: #{tpu_custom_call.1} parent=5 // pred_fallthru
      _
    %p169 = scmp.lt.s32.totalorder %s10, 2
    // Predicated region
    $region21: #{tpu_custom_call.1} parent=5 // pred_check
      %p170 = pneg %p169
    $region22: #{tpu_custom_call.1} parent=5 // pred_check_branch
      %172 = sbr.rel (%p170) target = $region24
    $region23: #{tpu_custom_call.1} parent=5 // pred_region
      // Predicated region
      $region25: #{tpu_custom_call.1} parent=23 // pred_check
        %p173 = pneg %p86
      $region26: #{tpu_custom_call.1} parent=23 // pred_check_branch
        %175 = sbr.rel (%p173) target = $region28
      $region27: #{tpu_custom_call.1} parent=23 // pred_region
        %p176 = scmp.lt.s32.totalorder %s17, 1
        %s177 = scalar_select %p176, %s17, 1
        %p178 = scmp.lt.s32.totalorder %s18, 0
        %s179 = scalar_select %p178, %s18, 0
        %s180 = smul.addr %s177, 31
        %s181 = sadd.s32 %s179, %s180
        %s182 = smul.addr %s181, 8
        %s183 = scalar_lea.vmem %s2, %s182
      $region28: #{tpu_custom_call.1} parent=23 // pred_fallthru
        _
      // Predicated region
      $region29: #{tpu_custom_call.1} parent=23 // pred_check
        %p184 = pneg %p114
      $region30: #{tpu_custom_call.1} parent=23 // pred_check_branch
        %186 = sbr.rel (%p184) target = $region32
      $region31: #{tpu_custom_call.1} parent=23 // pred_region
        %p187 = scmp.lt.s32.totalorder %s17, 1
        %s188 = scalar_select %p187, %s17, 1
        %p189 = scmp.lt.s32.totalorder %s18, 0
        %s190 = scalar_select %p189, %s18, 0
        %s191 = smul.addr %s188, 31
        %s192 = sadd.s32 %s190, %s191
        %s193 = smul.addr %s192, 8
        %s194 = scalar_lea.vmem %s3, %s193
      $region32: #{tpu_custom_call.1} parent=23 // pred_fallthru
        _
    $region24: #{tpu_custom_call.1} parent=5 // pred_fallthru
      _
    %p195 = scmp.le.s32.totalorder 1, %s10
    %p196 = scmp.lt.s32.totalorder %s10, 3
    %p197 = pnand %p195, %p196
    %p198 = pneg %p197
    // Predicated region
    $region33: #{tpu_custom_call.1} parent=5 // pred_check
      _
    $region34: #{tpu_custom_call.1} parent=5 // pred_check_branch
      %200 = sbr.rel (%p197) target = $region36
    $region35: #{tpu_custom_call.1} parent=5 // pred_region
      %s201 = ssub.s32 %s10, 1
      %p202 = pneg %p43
      %p203 = pneg %p40
      %p204 = pneg %p64
      %p205 = pneg %p61
      %p206 = scmp.lt.s32.totalorder %s19, 1
      %s207 = scalar_select %p206, %s19, 1
      %p208 = scmp.lt.s32.totalorder %s20, 0
      %s209 = scalar_select %p208, %s20, 0
      %s210 = smul.addr %s207, 31
      %s211 = sadd.s32 %s209, %s210
      %s212 = smul.addr %s211, 8
      %s213 = scalar_lea.vmem %s2, %s212
      %p214 = pneg %p92
      %p215 = pneg %p89
      %p216 = scmp.lt.s32.totalorder %s19, 1
      %s217 = scalar_select %p216, %s19, 1
      %p218 = scmp.lt.s32.totalorder %s20, 0
      %s219 = scalar_select %p218, %s20, 0
      %s220 = smul.addr %s217, 31
      %s221 = sadd.s32 %s219, %s220
      %s222 = smul.addr %s221, 8
      %s223 = scalar_lea.vmem %s3, %s222
      %p224 = pneg %p120
      %p225 = pneg %p117
      %p226 = pneg %p148
      %p227 = pneg %p145
      %p228 = scmp.lt.s32.totalorder %s19, 1
      %s229 = scalar_select %p228, %s19, 1
      %p230 = scmp.lt.s32.totalorder %s20, 0
      %s231 = scalar_select %p230, %s20, 0
      %s232 = smul.addr %s229, 31
      %s233 = sadd.s32 %s231, %s232
      %s234 = smul.addr %s233, 8
      %s235 = scalar_lea.vmem %s4, %s234
      %p236 = scmp.lt.s32.totalorder %s19, 1
      %s237 = scalar_select %p236, %s19, 1
      %p238 = scmp.lt.s32.totalorder %s20, 0
      %s239 = scalar_select %p238, %s20, 0
      %s240 = smul.addr %s237, 31
      %s241 = sadd.s32 %s239, %s240
      %s242 = smul.addr %s241, 8
      %s243 = scalar_lea.vmem %s2, %s242
      %p244 = scmp.lt.s32.totalorder %s19, 1
      %s245 = scalar_select %p244, %s19, 1
      %p246 = scmp.lt.s32.totalorder %s20, 0
      %s247 = scalar_select %p246, %s20, 0
      %s248 = smul.addr %s245, 31
      %s249 = sadd.s32 %s247, %s248
      %s250 = smul.addr %s249, 8
      %s251 = scalar_lea.vmem %s3, %s250
      %p252 = scmp.lt.s32.totalorder %s19, 1
      %s253 = scalar_select %p252, %s19, 1
      %p254 = scmp.lt.s32.totalorder %s20, 0
      %s255 = scalar_select %p254, %s20, 0
      %s256 = smul.addr %s253, 31
      %s257 = sadd.s32 %s255, %s256
      %s258 = smul.addr %s257, 8
      %s259 = scalar_lea.vmem %s4, %s258
      %v261 = vld [vmem:[%s251] sm:$0xff]
      %v262 = vld [vmem:[%s251 + $0x8] sm:$0xff]
      %v263 = vld [vmem:[%s251 + $0x10] sm:$0xff]
      %v264 = vld [vmem:[%s251 + $0x18] sm:$0xff]
      %v265 = vld [vmem:[%s251 + $0x20] sm:$0xff]
      %v266 = vld [vmem:[%s251 + $0x28] sm:$0xff]
      %v267 = vld [vmem:[%s251 + $0x30] sm:$0xff]
      %v268 = vld [vmem:[%s251 + $0x38] sm:$0xff]
      %v269 = vld [vmem:[%s251 + $0x40] sm:$0xff]
      %v270 = vld [vmem:[%s251 + $0x48] sm:$0xff]
      %v271 = vld [vmem:[%s251 + $0x50] sm:$0xff]
      %v272 = vld [vmem:[%s251 + $0x58] sm:$0xff]
      %v273 = vld [vmem:[%s251 + $0x60] sm:$0xff]
      %v274 = vld [vmem:[%s251 + $0x68] sm:$0xff]
      %v275 = vld [vmem:[%s251 + $0x70] sm:$0xff]
      %v276 = vld [vmem:[%s251 + $0x78] sm:$0xff]
      %v277 = vld [vmem:[%s251 + $0x80] sm:$0xff]
      %v278 = vld [vmem:[%s251 + $0x88] sm:$0xff]
      %v279 = vld [vmem:[%s251 + $0x90] sm:$0xff]
      %v280 = vld [vmem:[%s251 + $0x98] sm:$0xff]
      %v281 = vld [vmem:[%s251 + $0xa0] sm:$0xff]
      %v282 = vld [vmem:[%s251 + $0xa8] sm:$0xff]
      %v283 = vld [vmem:[%s251 + $0xb0] sm:$0xff]
      %v284 = vld [vmem:[%s251 + $0xb8] sm:$0xff]
      %v285 = vld [vmem:[%s251 + $0xc0] sm:$0xff]
      %v286 = vld [vmem:[%s251 + $0xc8] sm:$0xff]
      %v287 = vld [vmem:[%s251 + $0xd0] sm:$0xff]
      %v288 = vld [vmem:[%s251 + $0xd8] sm:$0xff]
      %v289 = vld [vmem:[%s251 + $0xe0] sm:$0xff]
      %v290 = vld [vmem:[%s251 + $0xe8] sm:$0xff]
      %v291 = vld [vmem:[%s251 + $0xf0] sm:$0x1f]
      %v292 = vpack.c.bf16 %v262, %v261
      %v293 = vpack.c.bf16 %v264, %v263
      %v294 = vpack.c.bf16 %v266, %v265
      %v295 = vpack.c.bf16 %v268, %v267
      %v296 = vpack.c.bf16 %v270, %v269
      %v297 = vpack.c.bf16 %v272, %v271
      %v298 = vpack.c.bf16 %v274, %v273
      %v299 = vpack.c.bf16 %v276, %v275
      %v300 = vpack.c.bf16 %v278, %v277
      %v301 = vpack.c.bf16 %v280, %v279
      %v302 = vpack.c.bf16 %v282, %v281
      %v303 = vpack.c.bf16 %v284, %v283
      %v304 = vpack.c.bf16 %v286, %v285
      %v305 = vpack.c.bf16 %v288, %v287
      %v306 = vpack.c.bf16 %v290, %v289
      %v307 = vpack.c.bf16 %v291, %v291
      %v308 = vld [vmem:[%s0] sm:$0xff]
      %v309 = vld [vmem:[%s0 + $0x8] sm:$0xff]
      %v310 = vld [vmem:[%s0 + $0x10] sm:$0xff]
      %v311 = vld [vmem:[%s0 + $0x18] sm:$0xff]
      %v312 = vld [vmem:[%s0 + $0x20] sm:$0xff]
      %v313 = vld [vmem:[%s0 + $0x28] sm:$0xff]
      %v314 = vld [vmem:[%s0 + $0x30] sm:$0xff]
      %v315 = vld [vmem:[%s0 + $0x38] sm:$0xff]
      %v316 = vld [vmem:[%s0 + $0x40] sm:$0xff]
      %v317 = vld [vmem:[%s0 + $0x48] sm:$0xff]
      %v318 = vld [vmem:[%s0 + $0x50] sm:$0xff]
      %v319 = vld [vmem:[%s0 + $0x58] sm:$0xff]
      %v320 = vld [vmem:[%s0 + $0x60] sm:$0xff]
      %v321 = vld [vmem:[%s0 + $0x68] sm:$0xff]
      %v322 = vld [vmem:[%s0 + $0x70] sm:$0xff]
      %v323 = vld [vmem:[%s0 + $0x78] sm:$0xff]
      %v324 = vld [vmem:[%s0 + $0x80] sm:$0xff]
      %v325 = vld [vmem:[%s0 + $0x88] sm:$0xff]
      %v326 = vld [vmem:[%s0 + $0x90] sm:$0xff]
      %v327 = vld [vmem:[%s0 + $0x98] sm:$0xff]
      %v328 = vld [vmem:[%s0 + $0xa0] sm:$0xff]
      %v329 = vld [vmem:[%s0 + $0xa8] sm:$0xff]
      %v330 = vld [vmem:[%s0 + $0xb0] sm:$0xff]
      %v331 = vld [vmem:[%s0 + $0xb8] sm:$0xff]
      %v332 = vld [vmem:[%s0 + $0xc0] sm:$0xff]
      %v333 = vld [vmem:[%s0 + $0xc8] sm:$0xff]
      %v334 = vld [vmem:[%s0 + $0xd0] sm:$0xff]
      %v335 = vld [vmem:[%s0 + $0xd8] sm:$0xff]
      %v336 = vld [vmem:[%s0 + $0xe0] sm:$0xff]
      %v337 = vld [vmem:[%s0 + $0xe8] sm:$0xff]
      %v338 = vld [vmem:[%s0 + $0xf0] sm:$0x77]
      %v339 = vld [vmem:[%s1] sm:$0xff]
      %v340 = vld [vmem:[%s1 + $0x8] sm:$0xff]
      %v341 = vld [vmem:[%s1 + $0x10] sm:$0xff]
      %v342 = vld [vmem:[%s1 + $0x18] sm:$0xff]
      %v343 = vld [vmem:[%s1 + $0x20] sm:$0xff]
      %v344 = vld [vmem:[%s1 + $0x28] sm:$0xff]
      %v345 = vld [vmem:[%s1 + $0x30] sm:$0xff]
      %v346 = vld [vmem:[%s1 + $0x38] sm:$0xff]
      %v347 = vld [vmem:[%s1 + $0x40] sm:$0xff]
      %v348 = vld [vmem:[%s1 + $0x48] sm:$0xff]
      %v349 = vld [vmem:[%s1 + $0x50] sm:$0xff]
      %v350 = vld [vmem:[%s1 + $0x58] sm:$0xff]
      %v351 = vld [vmem:[%s1 + $0x60] sm:$0xff]
      %v352 = vld [vmem:[%s1 + $0x68] sm:$0xff]
      %v353 = vld [vmem:[%s1 + $0x70] sm:$0xff]
      %v354 = vld [vmem:[%s1 + $0x78] sm:$0xff]
      %v355 = vld [vmem:[%s1 + $0x80] sm:$0xff]
      %v356 = vld [vmem:[%s1 + $0x88] sm:$0xff]
      %v357 = vld [vmem:[%s1 + $0x90] sm:$0xff]
      %v358 = vld [vmem:[%s1 + $0x98] sm:$0xff]
      %v359 = vld [vmem:[%s1 + $0xa0] sm:$0xff]
      %v360 = vld [vmem:[%s1 + $0xa8] sm:$0xff]
      %v361 = vld [vmem:[%s1 + $0xb0] sm:$0xff]
      %v362 = vld [vmem:[%s1 + $0xb8] sm:$0xff]
      %v363 = vld [vmem:[%s1 + $0xc0] sm:$0xff]
      %v364 = vld [vmem:[%s1 + $0xc8] sm:$0xff]
      %v365 = vld [vmem:[%s1 + $0xd0] sm:$0xff]
      %v366 = vld [vmem:[%s1 + $0xd8] sm:$0xff]
      %v367 = vld [vmem:[%s1 + $0xe0] sm:$0xff]
      %v368 = vld [vmem:[%s1 + $0xe8] sm:$0xff]
      %v369 = vld [vmem:[%s1 + $0xf0] sm:$0x1f]
      %371 = vset.pattern.permute.xlu0 0
      %372 = vperm.xlu0 %371, %v339
      %v373 = vpop.permute.xlu0 %372
      %376 = vset.pattern.permute.xlu0 0
      %377 = vperm.xlu0 %376, %v340
      %v378 = vpop.permute.xlu0 %377
      %381 = vset.pattern.permute.xlu0 0
      %382 = vperm.xlu0 %381, %v341
      %v383 = vpop.permute.xlu0 %382
      %386 = vset.pattern.permute.xlu0 0
      %387 = vperm.xlu0 %386, %v342
      %v388 = vpop.permute.xlu0 %387
      %391 = vset.pattern.permute.xlu0 0
      %392 = vperm.xlu0 %391, %v343
      %v393 = vpop.permute.xlu0 %392
      %396 = vset.pattern.permute.xlu0 0
      %397 = vperm.xlu0 %396, %v344
      %v398 = vpop.permute.xlu0 %397
      %401 = vset.pattern.permute.xlu0 0
      %402 = vperm.xlu0 %401, %v345
      %v403 = vpop.permute.xlu0 %402
      %406 = vset.pattern.permute.xlu0 0
      %407 = vperm.xlu0 %406, %v346
      %v408 = vpop.permute.xlu0 %407
      %411 = vset.pattern.permute.xlu0 0
      %412 = vperm.xlu0 %411, %v347
      %v413 = vpop.permute.xlu0 %412
      %416 = vset.pattern.permute.xlu0 0
      %417 = vperm.xlu0 %416, %v348
      %v418 = vpop.permute.xlu0 %417
      %421 = vset.pattern.permute.xlu0 0
      %422 = vperm.xlu0 %421, %v349
      %v423 = vpop.permute.xlu0 %422
      %426 = vset.pattern.permute.xlu0 0
      %427 = vperm.xlu0 %426, %v350
      %v428 = vpop.permute.xlu0 %427
      %431 = vset.pattern.permute.xlu0 0
      %432 = vperm.xlu0 %431, %v351
      %v433 = vpop.permute.xlu0 %432
      %436 = vset.pattern.permute.xlu0 0
      %437 = vperm.xlu0 %436, %v352
      %v438 = vpop.permute.xlu0 %437
      %441 = vset.pattern.permute.xlu0 0
      %442 = vperm.xlu0 %441, %v353
      %v443 = vpop.permute.xlu0 %442
      %446 = vset.pattern.permute.xlu0 0
      %447 = vperm.xlu0 %446, %v354
      %v448 = vpop.permute.xlu0 %447
      %451 = vset.pattern.permute.xlu0 0
      %452 = vperm.xlu0 %451, %v355
      %v453 = vpop.permute.xlu0 %452
      %456 = vset.pattern.permute.xlu0 0
      %457 = vperm.xlu0 %456, %v356
      %v458 = vpop.permute.xlu0 %457
      %461 = vset.pattern.permute.xlu0 0
      %462 = vperm.xlu0 %461, %v357
      %v463 = vpop.permute.xlu0 %462
      %466 = vset.pattern.permute.xlu0 0
      %467 = vperm.xlu0 %466, %v358
      %v468 = vpop.permute.xlu0 %467
      %471 = vset.pattern.permute.xlu0 0
      %472 = vperm.xlu0 %471, %v359
      %v473 = vpop.permute.xlu0 %472
      %476 = vset.pattern.permute.xlu0 0
      %477 = vperm.xlu0 %476, %v360
      %v478 = vpop.permute.xlu0 %477
      %481 = vset.pattern.permute.xlu0 0
      %482 = vperm.xlu0 %481, %v361
      %v483 = vpop.permute.xlu0 %482
      %486 = vset.pattern.permute.xlu0 0
      %487 = vperm.xlu0 %486, %v362
      %v488 = vpop.permute.xlu0 %487
      %491 = vset.pattern.permute.xlu0 0
      %492 = vperm.xlu0 %491, %v363
      %v493 = vpop.permute.xlu0 %492
      %496 = vset.pattern.permute.xlu0 0
      %497 = vperm.xlu0 %496, %v364
      %v498 = vpop.permute.xlu0 %497
      %501 = vset.pattern.permute.xlu0 0
      %502 = vperm.xlu0 %501, %v365
      %v503 = vpop.permute.xlu0 %502
      %506 = vset.pattern.permute.xlu0 0
      %507 = vperm.xlu0 %506, %v366
      %v508 = vpop.permute.xlu0 %507
      %511 = vset.pattern.permute.xlu0 0
      %512 = vperm.xlu0 %511, %v367
      %v513 = vpop.permute.xlu0 %512
      %516 = vset.pattern.permute.xlu0 0
      %517 = vperm.xlu0 %516, %v368
      %v518 = vpop.permute.xlu0 %517
      %521 = vset.pattern.permute.xlu0 0
      %522 = vperm.xlu0 %521, %v369
      %v523 = vpop.permute.xlu0 %522
      %v556 = vunpack.c.l.b16 %v308
      %v557 = vunpack.c.h.b16 %v308
      %v558 = vunpack.c.l.b16 %v309
      %v559 = vunpack.c.h.b16 %v309
      %v560 = vunpack.c.l.b16 %v310
      %v561 = vunpack.c.h.b16 %v310
      %v562 = vunpack.c.l.b16 %v311
      %v563 = vunpack.c.h.b16 %v311
      %v564 = vunpack.c.l.b16 %v312
      %v565 = vunpack.c.h.b16 %v312
      %v566 = vunpack.c.l.b16 %v313
      %v567 = vunpack.c.h.b16 %v313
      %v568 = vunpack.c.l.b16 %v314
      %v569 = vunpack.c.h.b16 %v314
      %v570 = vunpack.c.l.b16 %v315
      %v571 = vunpack.c.h.b16 %v315
      %v572 = vunpack.c.l.b16 %v316
      %v573 = vunpack.c.h.b16 %v316
      %v574 = vunpack.c.l.b16 %v317
      %v575 = vunpack.c.h.b16 %v317
      %v576 = vunpack.c.l.b16 %v318
      %v577 = vunpack.c.h.b16 %v318
      %v578 = vunpack.c.l.b16 %v319
      %v579 = vunpack.c.h.b16 %v319
      %v580 = vunpack.c.l.b16 %v320
      %v581 = vunpack.c.h.b16 %v320
      %v582 = vunpack.c.l.b16 %v321
      %v583 = vunpack.c.h.b16 %v321
      %v584 = vunpack.c.l.b16 %v322
      %v585 = vunpack.c.h.b16 %v322
      %v586 = vunpack.c.l.b16 %v323
      %v587 = vunpack.c.h.b16 %v323
      %v588 = vunpack.c.l.b16 %v324
      %v589 = vunpack.c.h.b16 %v324
      %v590 = vunpack.c.l.b16 %v325
      %v591 = vunpack.c.h.b16 %v325
      %v592 = vunpack.c.l.b16 %v326
      %v593 = vunpack.c.h.b16 %v326
      %v594 = vunpack.c.l.b16 %v327
      %v595 = vunpack.c.h.b16 %v327
      %v596 = vunpack.c.l.b16 %v328
      %v597 = vunpack.c.h.b16 %v328
      %v598 = vunpack.c.l.b16 %v329
      %v599 = vunpack.c.h.b16 %v329
      %v600 = vunpack.c.l.b16 %v330
      %v601 = vunpack.c.h.b16 %v330
      %v602 = vunpack.c.l.b16 %v331
      %v603 = vunpack.c.h.b16 %v331
      %v604 = vunpack.c.l.b16 %v332
      %v605 = vunpack.c.h.b16 %v332
      %v606 = vunpack.c.l.b16 %v333
      %v607 = vunpack.c.h.b16 %v333
      %v608 = vunpack.c.l.b16 %v334
      %v609 = vunpack.c.h.b16 %v334
      %v610 = vunpack.c.l.b16 %v335
      %v611 = vunpack.c.h.b16 %v335
      %v612 = vunpack.c.l.b16 %v336
      %v613 = vunpack.c.h.b16 %v336
      %v614 = vunpack.c.l.b16 %v337
      %v615 = vunpack.c.h.b16 %v337
      %v616 = vunpack.c.l.b16 %v338
      %v617 = vunpack.c.h.b16 %v338
      %v618 = vpack.c.b16 %v558, %v556
      %v619 = vpack.c.b16 %v559, %v557
      %v620 = vpack.c.b16 %v562, %v560
      %v621 = vpack.c.b16 %v563, %v561
      %v622 = vpack.c.b16 %v566, %v564
      %v623 = vpack.c.b16 %v567, %v565
      %v624 = vpack.c.b16 %v570, %v568
      %v625 = vpack.c.b16 %v571, %v569
      %v626 = vpack.c.b16 %v574, %v572
      %v627 = vpack.c.b16 %v575, %v573
      %v628 = vpack.c.b16 %v578, %v576
      %v629 = vpack.c.b16 %v579, %v577
      %v630 = vpack.c.b16 %v582, %v580
      %v631 = vpack.c.b16 %v583, %v581
      %v632 = vpack.c.b16 %v586, %v584
      %v633 = vpack.c.b16 %v587, %v585
      %v634 = vpack.c.b16 %v590, %v588
      %v635 = vpack.c.b16 %v591, %v589
      %v636 = vpack.c.b16 %v594, %v592
      %v637 = vpack.c.b16 %v595, %v593
      %v638 = vpack.c.b16 %v598, %v596
      %v639 = vpack.c.b16 %v599, %v597
      %v640 = vpack.c.b16 %v602, %v600
      %v641 = vpack.c.b16 %v603, %v601
      %v642 = vpack.c.b16 %v606, %v604
      %v643 = vpack.c.b16 %v607, %v605
      %v644 = vpack.c.b16 %v610, %v608
      %v645 = vpack.c.b16 %v611, %v609
      %v646 = vpack.c.b16 %v614, %v612
      %v647 = vpack.c.b16 %v615, %v613
      %v648 = vpack.c.b16 %v616, %v616
      %v649 = vpack.c.b16 %v617, %v617
      %vm666 = vcmask 957440
      %v668 = vsel %vm666, %v619, 0
      %v671 = vsel %vm666, %v621, 0
      %v674 = vsel %vm666, %v623, 0
      %v677 = vsel %vm666, %v625, 0
      %v680 = vsel %vm666, %v627, 0
      %v683 = vsel %vm666, %v629, 0
      %v686 = vsel %vm666, %v631, 0
      %v689 = vsel %vm666, %v633, 0
      %v692 = vsel %vm666, %v635, 0
      %v695 = vsel %vm666, %v637, 0
      %v698 = vsel %vm666, %v639, 0
      %v701 = vsel %vm666, %v641, 0
      %v704 = vsel %vm666, %v643, 0
      %v707 = vsel %vm666, %v645, 0
      %v710 = vsel %vm666, %v647, 0
      %v713 = vsel %vm666, %v649, 0
      %vm715 = vcmask 1041408
      %vm716 = vcmask 1042432
      %v717 = vsel %vm715, 4294967295, 65535
      %v718 = vsel %vm716, %v717, 0
      %v720 = vand.u32 %v307, %v718
      %722 = vmatprep.subr.bf16.mxu0 0
      %723 = vmatpush1.bf16.msra.mxu0 %v292
      %724 = vmatprep.subr.bf16.mxu0 0
      %725 = vmatpush1.bf16.msra.mxu0 %v293
      %726 = vmatprep.subr.bf16.mxu0 0
      %727 = vmatpush1.bf16.msra.mxu0 %v294
      %728 = vmatprep.subr.bf16.mxu0 0
      %729 = vmatpush1.bf16.msra.mxu0 %v295
      %730 = vmatprep.subr.bf16.mxu0 0
      %731 = vmatpush1.bf16.msra.mxu0 %v296
      %732 = vmatprep.subr.bf16.mxu0 0
      %733 = vmatpush1.bf16.msra.mxu0 %v297
      %734 = vmatprep.subr.bf16.mxu0 0
      %735 = vmatpush1.bf16.msra.mxu0 %v298
      %736 = vmatprep.subr.bf16.mxu0 0
      %737 = vmatpush1.bf16.msra.mxu0 %v299
      %738 = vmatprep.subr.bf16.mxu0 0
      %739 = vmatpush1.bf16.msra.mxu0 %v300
      %740 = vmatprep.subr.bf16.mxu0 0
      %741 = vmatpush1.bf16.msra.mxu0 %v301
      %742 = vmatprep.subr.bf16.mxu0 0
      %743 = vmatpush1.bf16.msra.mxu0 %v302
      %744 = vmatprep.subr.bf16.mxu0 0
      %745 = vmatpush1.bf16.msra.mxu0 %v303
      %746 = vmatprep.subr.bf16.mxu0 0
      %747 = vmatpush1.bf16.msra.mxu0 %v304
      %748 = vmatprep.subr.bf16.mxu0 0
      %749 = vmatpush1.bf16.msra.mxu0 %v305
      %750 = vmatprep.subr.bf16.mxu0 0
      %751 = vmatpush1.bf16.msra.mxu0 %v306
      %752 = vmatprep.subr.bf16.mxu0 0
      %753 = vmatpush1.bf16.msra.mxu0 %v720
      %754 = vmatprep.mubr.bf16.mxu0 %v668
      %755 = vmatmul.mubr.bf16.gmra.mrb[0].mxu0 %v618
      %v756 = vpop.f32.mrb[0].mxu0
      %v757 = vadd.f32 %v373, %v756
      %v758 = vpop.f32.mrb[0].mxu0
      %v759 = vpop.f32.mrb[0].mxu0
      %v760 = vadd.f32 %v378, %v759
      %v761 = vpop.f32.mrb[0].mxu0
      %762 = vmatprep.mubr.bf16.mxu0 %v671
      %763 = vmatmul.mubr.bf16.gmra.mrb[0].mxu0 %v620
      %v764 = vpop.f32.mrb[0].mxu0
      %v765 = vadd.f32 %v383, %v764
      %v766 = vpop.f32.mrb[0].mxu0
      %v767 = vpop.f32.mrb[0].mxu0
      %v768 = vadd.f32 %v388, %v767
      %v769 = vpop.f32.mrb[0].mxu0
      %770 = vmatprep.mubr.bf16.mxu0 %v674
      %771 = vmatmul.mubr.bf16.gmra.mrb[0].mxu0 %v622
      %v772 = vpop.f32.mrb[0].mxu0
      %v773 = vadd.f32 %v393, %v772
      %v774 = vpop.f32.mrb[0].mxu0
      %v775 = vpop.f32.mrb[0].mxu0
      %v776 = vadd.f32 %v398, %v775
      %v777 = vpop.f32.mrb[0].mxu0
      %778 = vmatprep.mubr.bf16.mxu0 %v677
      %779 = vmatmul.mubr.bf16.gmra.mrb[0].mxu0 %v624
      %v780 = vpop.f32.mrb[0].mxu0
      %v781 = vadd.f32 %v403, %v780
      %v782 = vpop.f32.mrb[0].mxu0
      %v783 = vpop.f32.mrb[0].mxu0
      %v784 = vadd.f32 %v408, %v783
      %v785 = vpop.f32.mrb[0].mxu0
      %786 = vmatprep.mubr.bf16.mxu0 %v680
      %787 = vmatmul.mubr.bf16.gmra.mrb[0].mxu0 %v626
      %v788 = vpop.f32.mrb[0].mxu0
      %v789 = vadd.f32 %v413, %v788
      %v790 = vpop.f32.mrb[0].mxu0
      %v791 = vpop.f32.mrb[0].mxu0
      %v792 = vadd.f32 %v418, %v791
      %v793 = vpop.f32.mrb[0].mxu0
      %794 = vmatprep.mubr.bf16.mxu0 %v683
      %795 = vmatmul.mubr.bf16.gmra.mrb[0].mxu0 %v628
      %v796 = vpop.f32.mrb[0].mxu0
      %v797 = vadd.f32 %v423, %v796
      %v798 = vpop.f32.mrb[0].mxu0
      %v799 = vpop.f32.mrb[0].mxu0
      %v800 = vadd.f32 %v428, %v799
      %v801 = vpop.f32.mrb[0].mxu0
      %802 = vmatprep.mubr.bf16.mxu0 %v686
      %803 = vmatmul.mubr.bf16.gmra.mrb[0].mxu0 %v630
      %v804 = vpop.f32.mrb[0].mxu0
      %v805 = vadd.f32 %v433, %v804
      %v806 = vpop.f32.mrb[0].mxu0
      %v807 = vpop.f32.mrb[0].mxu0
      %v808 = vadd.f32 %v438, %v807
      %v809 = vpop.f32.mrb[0].mxu0
      %810 = vmatprep.mubr.bf16.mxu0 %v689
      %811 = vmatmul.mubr.bf16.gmra.mrb[0].mxu0 %v632
      %v812 = vpop.f32.mrb[0].mxu0
      %v813 = vadd.f32 %v443, %v812
      %v814 = vpop.f32.mrb[0].mxu0
      %v815 = vpop.f32.mrb[0].mxu0
      %v816 = vadd.f32 %v448, %v815
      %v817 = vpop.f32.mrb[0].mxu0
      %818 = vmatprep.mubr.bf16.mxu0 %v692
      %819 = vmatmul.mubr.bf16.gmra.mrb[0].mxu0 %v634
      %v820 = vpop.f32.mrb[0].mxu0
      %v821 = vadd.f32 %v453, %v820
      %v822 = vpop.f32.mrb[0].mxu0
      %v823 = vpop.f32.mrb[0].mxu0
      %v824 = vadd.f32 %v458, %v823
      %v825 = vpop.f32.mrb[0].mxu0
      %826 = vmatprep.mubr.bf16.mxu0 %v695
      %827 = vmatmul.mubr.bf16.gmra.mrb[0].mxu0 %v636
      %v828 = vpop.f32.mrb[0].mxu0
      %v829 = vadd.f32 %v463, %v828
      %v830 = vpop.f32.mrb[0].mxu0
      %v831 = vpop.f32.mrb[0].mxu0
      %v832 = vadd.f32 %v468, %v831
      %v833 = vpop.f32.mrb[0].mxu0
      %834 = vmatprep.mubr.bf16.mxu0 %v698
      %835 = vmatmul.mubr.bf16.gmra.mrb[0].mxu0 %v638
      %v836 = vpop.f32.mrb[0].mxu0
      %v837 = vadd.f32 %v473, %v836
      %v838 = vpop.f32.mrb[0].mxu0
      %v839 = vpop.f32.mrb[0].mxu0
      %v840 = vadd.f32 %v478, %v839
      %v841 = vpop.f32.mrb[0].mxu0
      %842 = vmatprep.mubr.bf16.mxu0 %v701
      %843 = vmatmul.mubr.bf16.gmra.mrb[0].mxu0 %v640
      %v844 = vpop.f32.mrb[0].mxu0
      %v845 = vadd.f32 %v483, %v844
      %v846 = vpop.f32.mrb[0].mxu0
      %v847 = vpop.f32.mrb[0].mxu0
      %v848 = vadd.f32 %v488, %v847
      %v849 = vpop.f32.mrb[0].mxu0
      %850 = vmatprep.mubr.bf16.mxu0 %v704
      %851 = vmatmul.mubr.bf16.gmra.mrb[0].mxu0 %v642
      %v852 = vpop.f32.mrb[0].mxu0
      %v853 = vadd.f32 %v493, %v852
      %v854 = vpop.f32.mrb[0].mxu0
      %v855 = vpop.f32.mrb[0].mxu0
      %v856 = vadd.f32 %v498, %v855
      %v857 = vpop.f32.mrb[0].mxu0
      %858 = vmatprep.mubr.bf16.mxu0 %v707
      %859 = vmatmul.mubr.bf16.gmra.mrb[0].mxu0 %v644
      %v860 = vpop.f32.mrb[0].mxu0
      %v861 = vadd.f32 %v503, %v860
      %v862 = vpop.f32.mrb[0].mxu0
      %v863 = vpop.f32.mrb[0].mxu0
      %v864 = vadd.f32 %v508, %v863
      %v865 = vpop.f32.mrb[0].mxu0
      %866 = vmatprep.mubr.bf16.mxu0 %v710
      %867 = vmatmul.mubr.bf16.gmra.mrb[0].mxu0 %v646
      %v868 = vpop.f32.mrb[0].mxu0
      %v869 = vadd.f32 %v513, %v868
      %v870 = vpop.f32.mrb[0].mxu0
      %v871 = vpop.f32.mrb[0].mxu0
      %v872 = vadd.f32 %v518, %v871
      %v873 = vpop.f32.mrb[0].mxu0
      %874 = vmatprep.mubr.bf16.mxu0 %v713
      %875 = vmatmul.mubr.bf16.gmra.mrb[0].mxu0 %v648
      %v876 = vpop.f32.mrb[0].mxu0
      %v877 = vadd.f32 %v523, %v876
      %v878 = vpop.f32.mrb[0].mxu0
      %v879 = vpop.f32.mrb[0].mxu0
      %v880 = vpop.f32.mrb[0].mxu0
      %881 = vdwg.mxu0
      %v882 = vxor.u32 %v757, 2147483648
      %v883 = vxor.u32 %v760, 2147483648
      %v884 = vxor.u32 %v765, 2147483648
      %v885 = vxor.u32 %v768, 2147483648
      %v886 = vxor.u32 %v773, 2147483648
      %v887 = vxor.u32 %v776, 2147483648
      %v888 = vxor.u32 %v781, 2147483648
      %v889 = vxor.u32 %v784, 2147483648
      %v890 = vxor.u32 %v789, 2147483648
      %v891 = vxor.u32 %v792, 2147483648
      %v892 = vxor.u32 %v797, 2147483648
      %v893 = vxor.u32 %v800, 2147483648
      %v894 = vxor.u32 %v805, 2147483648
      %v895 = vxor.u32 %v808, 2147483648
      %v896 = vxor.u32 %v813, 2147483648
      %v897 = vxor.u32 %v816, 2147483648
      %v898 = vxor.u32 %v821, 2147483648
      %v899 = vxor.u32 %v824, 2147483648
      %v900 = vxor.u32 %v829, 2147483648
      %v901 = vxor.u32 %v832, 2147483648
      %v902 = vxor.u32 %v837, 2147483648
      %v903 = vxor.u32 %v840, 2147483648
      %v904 = vxor.u32 %v845, 2147483648
      %v905 = vxor.u32 %v848, 2147483648
      %v906 = vxor.u32 %v853, 2147483648
      %v907 = vxor.u32 %v856, 2147483648
      %v908 = vxor.u32 %v861, 2147483648
      %v909 = vxor.u32 %v864, 2147483648
      %v910 = vxor.u32 %v869, 2147483648
      %v911 = vxor.u32 %v872, 2147483648
      %v912 = vxor.u32 %v877, 2147483648
      %v913 = vmul.f32 %v882, 1.442695
      %v914 = vpow.pop %v913
      %v915 = vmul.f32 %v883, 1.442695
      %v916 = vpow.pop %v915
      %v917 = vmul.f32 %v884, 1.442695
      %v918 = vpow.pop %v917
      %v919 = vmul.f32 %v885, 1.442695
      %v920 = vpow.pop %v919
      %v921 = vmul.f32 %v886, 1.442695
      %v922 = vpow.pop %v921
      %v923 = vmul.f32 %v887, 1.442695
      %v924 = vpow.pop %v923
      %v925 = vmul.f32 %v888, 1.442695
      %v926 = vpow.pop %v925
      %v927 = vmul.f32 %v889, 1.442695
      %v928 = vpow.pop %v927
      %v929 = vmul.f32 %v890, 1.442695
      %v930 = vpow.pop %v929
      %v931 = vmul.f32 %v891, 1.442695
      %v932 = vpow.pop %v931
      %v933 = vmul.f32 %v892, 1.442695
      %v934 = vpow.pop %v933
      %v935 = vmul.f32 %v893, 1.442695
      %v936 = vpow.pop %v935
      %v937 = vmul.f32 %v894, 1.442695
      %v938 = vpow.pop %v937
      %v939 = vmul.f32 %v895, 1.442695
      %v940 = vpow.pop %v939
      %v941 = vmul.f32 %v896, 1.442695
      %v942 = vpow.pop %v941
      %v943 = vmul.f32 %v897, 1.442695
      %v944 = vpow.pop %v943
      %v945 = vmul.f32 %v898, 1.442695
      %v946 = vpow.pop %v945
      %v947 = vmul.f32 %v899, 1.442695
      %v948 = vpow.pop %v947
      %v949 = vmul.f32 %v900, 1.442695
      %v950 = vpow.pop %v949
      %v951 = vmul.f32 %v901, 1.442695
      %v952 = vpow.pop %v951
      %v953 = vmul.f32 %v902, 1.442695
      %v954 = vpow.pop %v953
      %v955 = vmul.f32 %v903, 1.442695
      %v956 = vpow.pop %v955
      %v957 = vmul.f32 %v904, 1.442695
      %v958 = vpow.pop %v957
      %v959 = vmul.f32 %v905, 1.442695
      %v960 = vpow.pop %v959
      %v961 = vmul.f32 %v906, 1.442695
      %v962 = vpow.pop %v961
      %v963 = vmul.f32 %v907, 1.442695
      %v964 = vpow.pop %v963
      %v965 = vmul.f32 %v908, 1.442695
      %v966 = vpow.pop %v965
      %v967 = vmul.f32 %v909, 1.442695
      %v968 = vpow.pop %v967
      %v969 = vmul.f32 %v910, 1.442695
      %v970 = vpow.pop %v969
      %v971 = vmul.f32 %v911, 1.442695
      %v972 = vpow.pop %v971
      %v973 = vmul.f32 %v912, 1.442695
      %v974 = vpow.pop %v973
      %v975 = vadd.f32 %v914, 1.0
      %v976 = vadd.f32 %v916, 1.0
      %v977 = vadd.f32 %v918, 1.0
      %v978 = vadd.f32 %v920, 1.0
      %v979 = vadd.f32 %v922, 1.0
      %v980 = vadd.f32 %v924, 1.0
      %v981 = vadd.f32 %v926, 1.0
      %v982 = vadd.f32 %v928, 1.0
      %v983 = vadd.f32 %v930, 1.0
      %v984 = vadd.f32 %v932, 1.0
      %v985 = vadd.f32 %v934, 1.0
      %v986 = vadd.f32 %v936, 1.0
      %v987 = vadd.f32 %v938, 1.0
      %v988 = vadd.f32 %v940, 1.0
      %v989 = vadd.f32 %v942, 1.0
      %v990 = vadd.f32 %v944, 1.0
      %v991 = vadd.f32 %v946, 1.0
      %v992 = vadd.f32 %v948, 1.0
      %v993 = vadd.f32 %v950, 1.0
      %v994 = vadd.f32 %v952, 1.0
      %v995 = vadd.f32 %v954, 1.0
      %v996 = vadd.f32 %v956, 1.0
      %v997 = vadd.f32 %v958, 1.0
      %v998 = vadd.f32 %v960, 1.0
      %v999 = vadd.f32 %v962, 1.0
      %v1000 = vadd.f32 %v964, 1.0
      %v1001 = vadd.f32 %v966, 1.0
      %v1002 = vadd.f32 %v968, 1.0
      %v1003 = vadd.f32 %v970, 1.0
      %v1004 = vadd.f32 %v972, 1.0
      %v1005 = vadd.f32 %v974, 1.0
      %v1006 = vrcp.pop %v975
      %v1007 = vmul.f32 1.0, %v1006
      %v1008 = vrcp.pop %v976
      %v1009 = vmul.f32 1.0, %v1008
      %v1010 = vrcp.pop %v977
      %v1011 = vmul.f32 1.0, %v1010
      %v1012 = vrcp.pop %v978
      %v1013 = vmul.f32 1.0, %v1012
      %v1014 = vrcp.pop %v979
      %v1015 = vmul.f32 1.0, %v1014
      %v1016 = vrcp.pop %v980
      %v1017 = vmul.f32 1.0, %v1016
      %v1018 = vrcp.pop %v981
      %v1019 = vmul.f32 1.0, %v1018
      %v1020 = vrcp.pop %v982
      %v1021 = vmul.f32 1.0, %v1020
      %v1022 = vrcp.pop %v983
      %v1023 = vmul.f32 1.0, %v1022
      %v1024 = vrcp.pop %v984
      %v1025 = vmul.f32 1.0, %v1024
      %v1026 = vrcp.pop %v985
      %v1027 = vmul.f32 1.0, %v1026
      %v1028 = vrcp.pop %v986
      %v1029 = vmul.f32 1.0, %v1028
      %v1030 = vrcp.pop %v987
      %v1031 = vmul.f32 1.0, %v1030
      %v1032 = vrcp.pop %v988
      %v1033 = vmul.f32 1.0, %v1032
      %v1034 = vrcp.pop %v989
      %v1035 = vmul.f32 1.0, %v1034
      %v1036 = vrcp.pop %v990
      %v1037 = vmul.f32 1.0, %v1036
      %v1038 = vrcp.pop %v991
      %v1039 = vmul.f32 1.0, %v1038
      %v1040 = vrcp.pop %v992
      %v1041 = vmul.f32 1.0, %v1040
      %v1042 = vrcp.pop %v993
      %v1043 = vmul.f32 1.0, %v1042
      %v1044 = vrcp.pop %v994
      %v1045 = vmul.f32 1.0, %v1044
      %v1046 = vrcp.pop %v995
      %v1047 = vmul.f32 1.0, %v1046
      %v1048 = vrcp.pop %v996
      %v1049 = vmul.f32 1.0, %v1048
      %v1050 = vrcp.pop %v997
      %v1051 = vmul.f32 1.0, %v1050
      %v1052 = vrcp.pop %v998
      %v1053 = vmul.f32 1.0, %v1052
      %v1054 = vrcp.pop %v999
      %v1055 = vmul.f32 1.0, %v1054
      %v1056 = vrcp.pop %v1000
      %v1057 = vmul.f32 1.0, %v1056
      %v1058 = vrcp.pop %v1001
      %v1059 = vmul.f32 1.0, %v1058
      %v1060 = vrcp.pop %v1002
      %v1061 = vmul.f32 1.0, %v1060
      %v1062 = vrcp.pop %v1003
      %v1063 = vmul.f32 1.0, %v1062
      %v1064 = vrcp.pop %v1004
      %v1065 = vmul.f32 1.0, %v1064
      %v1066 = vrcp.pop %v1005
      %v1067 = vmul.f32 1.0, %v1066
      %v1068 = vld [vmem:[%s243] sm:$0xff]
      %v1069 = vld [vmem:[%s243 + $0x8] sm:$0xff]
      %v1070 = vld [vmem:[%s243 + $0x10] sm:$0xff]
      %v1071 = vld [vmem:[%s243 + $0x18] sm:$0xff]
      %v1072 = vld [vmem:[%s243 + $0x20] sm:$0xff]
      %v1073 = vld [vmem:[%s243 + $0x28] sm:$0xff]
      %v1074 = vld [vmem:[%s243 + $0x30] sm:$0xff]
      %v1075 = vld [vmem:[%s243 + $0x38] sm:$0xff]
      %v1076 = vld [vmem:[%s243 + $0x40] sm:$0xff]
      %v1077 = vld [vmem:[%s243 + $0x48] sm:$0xff]
      %v1078 = vld [vmem:[%s243 + $0x50] sm:$0xff]
      %v1079 = vld [vmem:[%s243 + $0x58] sm:$0xff]
      %v1080 = vld [vmem:[%s243 + $0x60] sm:$0xff]
      %v1081 = vld [vmem:[%s243 + $0x68] sm:$0xff]
      %v1082 = vld [vmem:[%s243 + $0x70] sm:$0xff]
      %v1083 = vld [vmem:[%s243 + $0x78] sm:$0xff]
      %v1084 = vld [vmem:[%s243 + $0x80] sm:$0xff]
      %v1085 = vld [vmem:[%s243 + $0x88] sm:$0xff]
      %v1086 = vld [vmem:[%s243 + $0x90] sm:$0xff]
      %v1087 = vld [vmem:[%s243 + $0x98] sm:$0xff]
      %v1088 = vld [vmem:[%s243 + $0xa0] sm:$0xff]
      %v1089 = vld [vmem:[%s243 + $0xa8] sm:$0xff]
      %v1090 = vld [vmem:[%s243 + $0xb0] sm:$0xff]
      %v1091 = vld [vmem:[%s243 + $0xb8] sm:$0xff]
      %v1092 = vld [vmem:[%s243 + $0xc0] sm:$0xff]
      %v1093 = vld [vmem:[%s243 + $0xc8] sm:$0xff]
      %v1094 = vld [vmem:[%s243 + $0xd0] sm:$0xff]
      %v1095 = vld [vmem:[%s243 + $0xd8] sm:$0xff]
      %v1096 = vld [vmem:[%s243 + $0xe0] sm:$0xff]
      %v1097 = vld [vmem:[%s243 + $0xe8] sm:$0xff]
      %v1098 = vld [vmem:[%s243 + $0xf0] sm:$0x1f]
      %v1099 = vmul.f32 %v1068, %v1007
      %v1100 = vmul.f32 %v1069, %v1009
      %v1101 = vmul.f32 %v1070, %v1011
      %v1102 = vmul.f32 %v1071, %v1013
      %v1103 = vmul.f32 %v1072, %v1015
      %v1104 = vmul.f32 %v1073, %v1017
      %v1105 = vmul.f32 %v1074, %v1019
      %v1106 = vmul.f32 %v1075, %v1021
      %v1107 = vmul.f32 %v1076, %v1023
      %v1108 = vmul.f32 %v1077, %v1025
      %v1109 = vmul.f32 %v1078, %v1027
      %v1110 = vmul.f32 %v1079, %v1029
      %v1111 = vmul.f32 %v1080, %v1031
      %v1112 = vmul.f32 %v1081, %v1033
      %v1113 = vmul.f32 %v1082, %v1035
      %v1114 = vmul.f32 %v1083, %v1037
      %v1115 = vmul.f32 %v1084, %v1039
      %v1116 = vmul.f32 %v1085, %v1041
      %v1117 = vmul.f32 %v1086, %v1043
      %v1118 = vmul.f32 %v1087, %v1045
      %v1119 = vmul.f32 %v1088, %v1047
      %v1120 = vmul.f32 %v1089, %v1049
      %v1121 = vmul.f32 %v1090, %v1051
      %v1122 = vmul.f32 %v1091, %v1053
      %v1123 = vmul.f32 %v1092, %v1055
      %v1124 = vmul.f32 %v1093, %v1057
      %v1125 = vmul.f32 %v1094, %v1059
      %v1126 = vmul.f32 %v1095, %v1061
      %v1127 = vmul.f32 %v1096, %v1063
      %v1128 = vmul.f32 %v1097, %v1065
      %v1129 = vmul.f32 %v1098, %v1067
      %1130 = vst [vmem:[%s259] sm:$0xff] %v1099
      %1131 = vst [vmem:[%s259 + $0x8] sm:$0xff] %v1100
      %1132 = vst [vmem:[%s259 + $0x10] sm:$0xff] %v1101
      %1133 = vst [vmem:[%s259 + $0x18] sm:$0xff] %v1102
      %1134 = vst [vmem:[%s259 + $0x20] sm:$0xff] %v1103
      %1135 = vst [vmem:[%s259 + $0x28] sm:$0xff] %v1104
      %1136 = vst [vmem:[%s259 + $0x30] sm:$0xff] %v1105
      %1137 = vst [vmem:[%s259 + $0x38] sm:$0xff] %v1106
      %1138 = vst [vmem:[%s259 + $0x40] sm:$0xff] %v1107
      %1139 = vst [vmem:[%s259 + $0x48] sm:$0xff] %v1108
      %1140 = vst [vmem:[%s259 + $0x50] sm:$0xff] %v1109
      %1141 = vst [vmem:[%s259 + $0x58] sm:$0xff] %v1110
      %1142 = vst [vmem:[%s259 + $0x60] sm:$0xff] %v1111
      %1143 = vst [vmem:[%s259 + $0x68] sm:$0xff] %v1112
      %1144 = vst [vmem:[%s259 + $0x70] sm:$0xff] %v1113
      %1145 = vst [vmem:[%s259 + $0x78] sm:$0xff] %v1114
      %1146 = vst [vmem:[%s259 + $0x80] sm:$0xff] %v1115
      %1147 = vst [vmem:[%s259 + $0x88] sm:$0xff] %v1116
      %1148 = vst [vmem:[%s259 + $0x90] sm:$0xff] %v1117
      %1149 = vst [vmem:[%s259 + $0x98] sm:$0xff] %v1118
      %1150 = vst [vmem:[%s259 + $0xa0] sm:$0xff] %v1119
      %1151 = vst [vmem:[%s259 + $0xa8] sm:$0xff] %v1120
      %1152 = vst [vmem:[%s259 + $0xb0] sm:$0xff] %v1121
      %1153 = vst [vmem:[%s259 + $0xb8] sm:$0xff] %v1122
      %1154 = vst [vmem:[%s259 + $0xc0] sm:$0xff] %v1123
      %1155 = vst [vmem:[%s259 + $0xc8] sm:$0xff] %v1124
      %1156 = vst [vmem:[%s259 + $0xd0] sm:$0xff] %v1125
      %1157 = vst [vmem:[%s259 + $0xd8] sm:$0xff] %v1126
      %1158 = vst [vmem:[%s259 + $0xe0] sm:$0xff] %v1127
      %1159 = vst [vmem:[%s259 + $0xe8] sm:$0xff] %v1128
      %1160 = vst [vmem:[%s259 + $0xf0] sm:$0x1f] %v1129
      %p1161 = scmp.lt.s32.totalorder %s19, 1
      %s1162 = scalar_select %p1161, %s19, 1
      %p1163 = scmp.lt.s32.totalorder %s20, 0
      %s1164 = scalar_select %p1163, %s20, 0
      %s1165 = smul.addr %s1162, 31
      %s1166 = sadd.s32 %s1164, %s1165
      %s1167 = smul.addr %s1166, 8
      %s1168 = scalar_lea.vmem %s4, %s1167
      // Predicated region
      $region37: #{tpu_custom_call.1} parent=35 // pred_check
        %p1169 = pneg %p145
      $region38: #{tpu_custom_call.1} parent=35 // pred_check_branch
        %1171 = sbr.rel (%p1169) target = $region40
      $region39: #{tpu_custom_call.1} parent=35 // pred_region
        _
      $region40: #{tpu_custom_call.1} parent=35 // pred_fallthru
        _
    $region36: #{tpu_custom_call.1} parent=5 // pred_fallthru
      _
    %p1172 = scmp.le.s32.totalorder 2, %s10
    // Predicated region
    $region41: #{tpu_custom_call.1} parent=5 // pred_check
      %p1173 = pneg %p1172
    $region42: #{tpu_custom_call.1} parent=5 // pred_check_branch
      %1175 = sbr.rel (%p1173) target = $region44
    $region43: #{tpu_custom_call.1} parent=5 // pred_region
      %s1176 = ssub.s32 %s10, 2
      // Predicated region
      $region45: #{tpu_custom_call.1} parent=43 // pred_check
        %p1177 = pneg %p151
      $region46: #{tpu_custom_call.1} parent=43 // pred_check_branch
        %1179 = sbr.rel (%p1177) target = $region48
      $region47: #{tpu_custom_call.1} parent=43 // pred_region
        %p1180 = scmp.lt.s32.totalorder %s21, 1
        %s1181 = scalar_select %p1180, %s21, 1
        %p1182 = scmp.lt.s32.totalorder %s22, 0
        %s1183 = scalar_select %p1182, %s22, 0
        %s1184 = smul.addr %s1181, 31
        %s1185 = sadd.s32 %s1183, %s1184
        %s1186 = smul.addr %s1185, 8
        %s1187 = scalar_lea.vmem %s4, %s1186
      $region48: #{tpu_custom_call.1} parent=43 // pred_fallthru
        _
    $region44: #{tpu_custom_call.1} parent=5 // pred_fallthru
      _
  $region6: #{tpu_custom_call.1} parent=0 // loop_footer
    %s14 = sadd.s32 1, %s10
  $region7: #{tpu_custom_call.1} parent=0 // loop_footer_branch
    %9 = sbr.rel target = $region3
  $region8: #{tpu_custom_call.1} parent=0 // loop_exit
    _

</llo_original>
